<compile_context>
chip_gen: v7x
topology: tpu7x:2x2x1
jax: 0.10.0
libtpu: 0.0.40
codegen_flags: <defaults>
</compile_context>

<pallas_src>
import functools

import jax
import jax.numpy as jnp
from jax.experimental import pallas as pl
from jax.experimental.pallas import tpu as pltpu


_ACC_ROWS = 8  # sublane-parallel partial sums per accumulator


def _stft_loss_kernel(x_ref, y_ref, abs_ref, sqd_ref, sqy_ref, *,
                      n_rows, block_rows, blocks_per_core):
    """Accumulate partial sums of |log(y/x)|, (y - x)^2 and y^2 for one tile."""
    p = pl.program_id(0)  # TensorCore split ("parallel")
    k = pl.program_id(1)  # reduction step   ("arbitrary")

    @pl.when(k == 0)
    def _init():
        abs_ref[...] = jnp.zeros_like(abs_ref)
        sqd_ref[...] = jnp.zeros_like(sqd_ref)
        sqy_ref[...] = jnp.zeros_like(sqy_ref)

    # Global row offset of this tile -> mask for partial tail tiles and for the
    # duplicate (clamped) block core 1 gets when the block count is odd.  The block
    # index here is intentionally UNclamped so a duplicate block masks to all-invalid.
    blk = p * blocks_per_core + k
    row0 = blk * block_rows
    row_ids = jax.lax.broadcasted_iota(jnp.int32, (block_rows, 1), 0) + row0
    valid = row_ids < n_rows

    x = x_ref[...].astype(jnp.float32)
    y = y_ref[...].astype(jnp.float32)

    # Masked rows -> 1.0: log(1/1) = 0 and (1-1)^2 = 0 contribute nothing; the select
    # happens before the divide/log so garbage in OOB rows never reaches the EUP.
    x_m = jnp.where(valid, x, 1.0)
    y_m = jnp.where(valid, y, 1.0)

    # One EUP log per element instead of two: |log y - log x| == |log(y / x)|.
    abs_term = jnp.abs(jnp.log(y_m / x_m))

    d = y_m - x_m                       # masked rows: 1 - 1 = 0
    sqd_term = d * d
    y_z = jnp.where(valid, y, 0.0)      # masked rows contribute 0 to ||y||^2
    sqy_term = y_z * y_z

    n_cols = x.shape[-1]
    groups = block_rows // _ACC_ROWS    # block_rows is always a multiple of 8

    def accumulate(o_ref, term):
        # Sublane-group reshape is layout-preserving (no (8,128) tile crossing);
        # the sum over the major axis is pure VPU vreg adds.  The single cross-lane /
        # cross-sublane reduce is deferred to the tiny XLA epilogue.
        part = term.reshape(groups, _ACC_ROWS, n_cols).sum(axis=0)   # (8, C)
        o_ref[...] = o_ref[...] + part[None]

    accumulate(abs_ref, abs_term)
    accumulate(sqd_ref, sqd_term)
    accumulate(sqy_ref, sqy_term)


def _as_2d(a):
    """Copy-free reshape to a 2-D slab: lane-dense (N/128, 128) when possible."""
    n = a.size
    if n % 128 == 0:
        return a.reshape(n // 128, 128)
    return a.reshape(-1, a.shape[-1])


def _round_up(v, m):
    return ((v + m - 1) // m) * m


def _tile_budget():
    """(target_block_bytes per input, vmem_limit_bytes) sized per TPU generation."""
    cap = None
    try:
        cap = int(pltpu.get_tpu_info().vmem_capacity_bytes)
    except Exception:
        cap = None
    if cap is not None and cap >= 100 * 1024 * 1024:
        # v5e / v6e: 128 MiB physical VMEM -> big tiles, raised scoped limit.
        return 8 * 1024 * 1024, 64 * 1024 * 1024
    # v7x-class (64 MiB/TC) or unknown chip: safe everywhere.
    # 2 inputs x 2 buffers x 6 MiB = 24 MiB << 40 MiB limit.
    return 6 * 1024 * 1024, 40 * 1024 * 1024


def stft_losses_from_mags(x_mag, y_mag, *, eps=None,
                          target_block_bytes=None, vmem_limit_bytes=None,
                          max_block_rows=None):
    """Fused (sc_loss, mag_loss) from two magnitude spectrograms in one Pallas pass.

    Note: like the PyTorch reference, log() is taken on the magnitudes as given; the
    reference only avoids -inf because stft() clamps at 1e-7 upstream.  Pass eps=1e-7
    if calling this directly with magnitudes that may contain zeros.
    """
    assert x_mag.shape == y_mag.shape, "x_mag / y_mag must match"
    if eps is not None:
        x_mag = jnp.maximum(x_mag, eps)
        y_mag = jnp.maximum(y_mag, eps)
    n_elems = x_mag.size

    x2 = _as_2d(x_mag)
    y2 = _as_2d(y_mag)
    n_rows, n_cols = x2.shape

    auto_block_bytes, auto_vmem = _tile_budget()
    if target_block_bytes is None:
        target_block_bytes = auto_block_bytes
    if vmem_limit_bytes is None:
        vmem_limit_bytes = auto_vmem

    # Minimum sublane granularity by dtype (f32: 8, bf16: 16, int8/fp8: 32).
    min_rows = {4: 8, 2: 16, 1: 32}.get(x2.dtype.itemsize, 8)
    padded_cols = _round_up(n_cols, 128)                 # VMEM lane padding
    bytes_per_row = padded_cols * x2.dtype.itemsize
    target_rows = max(min_rows,
                      (target_block_bytes // bytes_per_row) // min_rows * min_rows)
    if max_block_rows is not None:
        target_rows = min(target_rows,
                          max(min_rows, max_block_rows // min_rows * min_rows))
    block_rows = min(target_rows, _round_up(n_rows, min_rows))
    num_blocks = pl.cdiv(n_rows, block_rows)

    # Unconditional 2-TensorCore split whenever there is more than one block (v7x
    # megacore); single-TC chips just run the "parallel" axis sequentially.  With an
    # odd block count core 1 gets one duplicate block: its index is clamped below so
    # it reads valid memory, and the in-kernel row mask zeroes its contribution.
    n_cores = 2 if num_blocks >= 2 else 1
    blocks_per_core = pl.cdiv(num_blocks, n_cores)

    kernel = functools.partial(
        _stft_loss_kernel,
        n_rows=n_rows, block_rows=block_rows, blocks_per_core=blocks_per_core)

    last_blk = num_blocks - 1

    def in_map(p, k):
        blk = p * blocks_per_core + k
        return (jnp.minimum(blk, last_blk), 0)   # clamp OOB duplicate block

    out_map = lambda p, k: (p, 0, 0)
    acc_shape = jax.ShapeDtypeStruct((n_cores, _ACC_ROWS, n_cols), jnp.float32)
    acc_spec = pl.BlockSpec((1, _ACC_ROWS, n_cols), out_map)

    abs_acc, sqd_acc, sqy_acc = pl.pallas_call(
        kernel,
        out_shape=(acc_shape, acc_shape, acc_shape),
        grid_spec=pltpu.PrefetchScalarGridSpec(
            num_scalar_prefetch=0,
            grid=(n_cores, blocks_per_core),
            in_specs=[
                pl.BlockSpec((block_rows, n_cols), in_map),
                pl.BlockSpec((block_rows, n_cols), in_map),
            ],
            out_specs=[acc_spec, acc_spec, acc_spec],
        ),
        compiler_params=pltpu.CompilerParams(
            dimension_semantics=("parallel", "arbitrary"),
            vmem_limit_bytes=vmem_limit_bytes,
        ),
    )(x2, y2)

    # Tiny epilogue on the (n_cores, 8, C) partials (few KiB).
    s_abs = jnp.sum(abs_acc)
    s_sqd = jnp.sum(sqd_acc)
    s_sqy = jnp.sum(sqy_acc)
    mag_loss = s_abs / float(n_elems)
    sc_loss = jnp.sqrt(s_sqd) / jnp.sqrt(s_sqy)
    return sc_loss, mag_loss


def spectral_convergence_loss(x_mag, y_mag, **kwargs):
    """SpectralConvergengeLoss.forward(x_mag, y_mag)."""
    return stft_losses_from_mags(x_mag, y_mag, **kwargs)[0]


def log_stft_magnitude_loss(x_mag, y_mag, **kwargs):
    """LogSTFTMagnitudeLoss.forward(x_mag, y_mag)."""
    return stft_losses_from_mags(x_mag, y_mag, **kwargs)[1]


# ----------------------------- STFT front-end (XLA) -----------------------------

def _hann_window(win_length, dtype=jnp.float32):
    n = jnp.arange(win_length, dtype=dtype)
    return 0.5 - 0.5 * jnp.cos(2.0 * jnp.pi * n / win_length)


def stft_magnitude(x, fft_size, hop_size, win_length, window, out_dtype=jnp.float32):
    """|STFT(x)| with torch.stft defaults (center=True, reflect pad, onesided),
    clamped like the reference: sqrt(clamp(re^2 + im^2, min=1e-7)).
    Returns (B, frames, fft_size//2 + 1).  out_dtype=jnp.bfloat16 halves the loss
    kernel's HBM traffic (kernel accumulates in f32 either way)."""
    if x.ndim == 1:
        x = x[None, :]
    pad = fft_size - win_length
    win = jnp.pad(window, (pad // 2, pad - pad // 2))
    half = fft_size // 2
    xp = jnp.pad(x, ((0, 0), (half, half)), mode="reflect")
    n_frames = 1 + (xp.shape[-1] - fft_size) // hop_size
    idx = hop_size * jnp.arange(n_frames)[:, None] + jnp.arange(fft_size)[None, :]
    frames = xp[:, idx] * win[None, None, :]
    spec = jnp.fft.rfft(frames.astype(jnp.float32), axis=-1)
    power = jnp.real(spec) ** 2 + jnp.imag(spec) ** 2
    return jnp.sqrt(jnp.clip(power, 1e-7, None)).astype(out_dtype)


def stft_loss(x, y, *, fft_size=1024, shift_size=120, win_length=600,
              mag_dtype=jnp.float32):
    """Pallas/JAX equivalent of STFTLoss.forward(x, y) -> (sc_loss, mag_loss)."""
    # TODO(synk): the FFT itself stays in XLA (jnp.fft.rfft) -- Mosaic/Pallas has no FFT
    # primitive; only the memory-bound loss reductions run in the Pallas kernel.
    window = _hann_window(win_length)
    x_mag = stft_magnitude(x, fft_size, shift_size, win_length, window, out_dtype=mag_dtype)
    y_mag = stft_magnitude(y, fft_size, shift_size, win_length, window, out_dtype=mag_dtype)
    return stft_losses_from_mags(x_mag, y_mag)


# -------------------------------------- demo --------------------------------------

def _ref_losses(x_mag, y_mag):
    x_mag = x_mag.astype(jnp.float32)
    y_mag = y_mag.astype(jnp.float32)
    sc = jnp.sqrt(jnp.sum((y_mag - x_mag) ** 2)) / jnp.sqrt(jnp.sum(y_mag ** 2))
    mag = jnp.mean(jnp.abs(jnp.log(y_mag) - jnp.log(x_mag)))
    return sc, mag


if __name__ == "__main__":
    key = jax.random.PRNGKey(0)
    k1, k2, k3, k4, k5, k6 = jax.random.split(key, 6)

    def check(name, got, want):
        got = jax.block_until_ready(got)
        assert bool(jnp.allclose(got, want, rtol=1e-4, atol=1e-6)), (name, got, want)

    # 1) Magnitude-level fused losses, lane-dense path (N % 128 == 0, single tile).
    B, T, F = 2, 12, 128
    x_mag = jnp.abs(jax.random.normal(k1, (B, T, F), jnp.float32)) + 0.1
    y_mag = jnp.abs(jax.random.normal(k2, (B, T, F), jnp.float32)) + 0.1
    sc, mag = stft_losses_from_mags(x_mag, y_mag)
    sc_r, mag_r = _ref_losses(x_mag, y_mag)
    check("sc@lane_dense", sc, sc_r)
    check("mag@lane_dense", mag, mag_r)

    # 2) Multi-tile grid + masked row tail + even 2-way TensorCore split (small tiles).
    x_mag2 = jnp.abs(jax.random.normal(k3, (2, 50, 128), jnp.float32)) + 0.1
    y_mag2 = jnp.abs(jax.random.normal(k4, (2, 50, 128), jnp.float32)) + 0.1
    sc2, mag2 = stft_losses_from_mags(x_mag2, y_mag2, max_block_rows=32)
    sc2_r, mag2_r = _ref_losses(x_mag2, y_mag2)
    check("sc@tiled_masked", sc2, sc2_r)
    check("mag@tiled_masked", mag2, mag2_r)

    # 2b) Odd block count: forced 2-core split with a clamped, fully-masked duplicate block.
    sc2b, mag2b = stft_losses_from_mags(x_mag2, y_mag2, max_block_rows=40)
    check("sc@odd_blocks", sc2b, sc2_r)
    check("mag@odd_blocks", mag2b, mag2_r)

    # 3) Full STFTLoss.forward on raw waveforms (freq = fft//2+1 = 129, generic-C path).
    xw = jax.random.normal(k5, (2, 2048), jnp.float32)
    yw = xw + 0.1 * jax.random.normal(k6, (2, 2048), jnp.float32)
    sc3, mag3 = stft_loss(xw, yw, fft_size=256, shift_size=64, win_length=128)
    win = _hann_window(128)
    xm = stft_magnitude(xw, 256, 64, 128, win)
    ym = stft_magnitude(yw, 256, 64, 128, win)
    sc3_r, mag3_r = _ref_losses(xm, ym)
    check("sc@stft", sc3, sc3_r)
    check("mag@stft", mag3, mag3_r)

    print("KERNEL_OK")
</pallas_src>

<mosaic_0001>
module attributes {stable_mosaic.version = 11 : i64} {
  func.func @_stft_loss_kernel(%arg0: i32, %arg1: i32, %arg2: memref<24x128xf32, #tpu.memory_space<vmem>>, %arg3: memref<24x128xf32, #tpu.memory_space<vmem>>, %arg4: memref<1x8x128xf32, #tpu.memory_space<vmem>>, %arg5: memref<1x8x128xf32, #tpu.memory_space<vmem>>, %arg6: memref<1x8x128xf32, #tpu.memory_space<vmem>>) attributes {dimension_semantics = [#tpu.dimension_semantics<parallel>, #tpu.dimension_semantics<arbitrary>], iteration_bounds = array<i64: 1, 1>, scalar_prefetch = 0 : i64, scratch_operands = 0 : i64, tpu.core_type = #tpu.core_type<tc>, window_params = [{transform_indices = @transform_0, window_bounds = array<i64: 24, 128>}, {transform_indices = @transform_1, window_bounds = array<i64: 24, 128>}, {transform_indices = @transform_2, window_bounds = array<i64: 1, 8, 128>}, {transform_indices = @transform_3, window_bounds = array<i64: 1, 8, 128>}, {transform_indices = @transform_4, window_bounds = array<i64: 1, 8, 128>}]} {
    %c0_i32 = arith.constant 0 : i32
    %0 = arith.cmpi eq, %arg1, %c0_i32 : i32
    %1 = arith.extui %0 : i1 to i32
    %c0_i32_0 = arith.constant 0 : i32
    %2 = arith.cmpi ne, %1, %c0_i32_0 : i32
    scf.if %2 {
      %cst_28 = arith.constant 0.000000e+00 : f32
      %49 = vector.broadcast %cst_28 : f32 to vector<1x8x128xf32>
      %c0_29 = arith.constant 0 : index
      %c0_30 = arith.constant 0 : index
      %c0_31 = arith.constant 0 : index
      %50 = vector.load %arg4[%c0_29, %c0_30, %c0_31] : memref<1x8x128xf32, #tpu.memory_space<vmem>>, vector<1x8x128xf32>
      tpu.vector_store %arg4[%c0_29, %c0_30, %c0_31], %49 {strides = array<i32>} : memref<1x8x128xf32, #tpu.memory_space<vmem>>, vector<1x8x128xf32>,
      %cst_32 = arith.constant 0.000000e+00 : f32
      %51 = vector.broadcast %cst_32 : f32 to vector<1x8x128xf32>
      %c0_33 = arith.constant 0 : index
      %c0_34 = arith.constant 0 : index
      %c0_35 = arith.constant 0 : index
      %52 = vector.load %arg5[%c0_33, %c0_34, %c0_35] : memref<1x8x128xf32, #tpu.memory_space<vmem>>, vector<1x8x128xf32>
      tpu.vector_store %arg5[%c0_33, %c0_34, %c0_35], %51 {strides = array<i32>} : memref<1x8x128xf32, #tpu.memory_space<vmem>>, vector<1x8x128xf32>,
      %cst_36 = arith.constant 0.000000e+00 : f32
      %53 = vector.broadcast %cst_36 : f32 to vector<1x8x128xf32>
      %c0_37 = arith.constant 0 : index
      %c0_38 = arith.constant 0 : index
      %c0_39 = arith.constant 0 : index
      %54 = vector.load %arg6[%c0_37, %c0_38, %c0_39] : memref<1x8x128xf32, #tpu.memory_space<vmem>>, vector<1x8x128xf32>
      tpu.vector_store %arg6[%c0_37, %c0_38, %c0_39], %53 {strides = array<i32>} : memref<1x8x128xf32, #tpu.memory_space<vmem>>, vector<1x8x128xf32>,
    } else {
    }
    %c1_i32 = arith.constant 1 : i32
    %3 = arith.muli %arg0, %c1_i32 : i32
    %4 = arith.addi %3, %arg1 : i32
    %c24_i32 = arith.constant 24 : i32
    %5 = arith.muli %4, %c24_i32 : i32
    %6 = tpu.iota {dimensions = array<i32: 0>} : vector<24x1xi32>
    %7 = vector.broadcast %5 : i32 to vector<24x1xi32>
    %8 = arith.addi %6, %7 : vector<24x1xi32>
    %c24_i32_1 = arith.constant 24 : i32
    %9 = vector.broadcast %c24_i32_1 : i32 to vector<24x1xi32>
    %10 = arith.cmpi slt, %8, %9 : vector<24x1xi32>
    %c0 = arith.constant 0 : index
    %c0_2 = arith.constant 0 : index
    %11 = vector.load %arg2[%c0, %c0_2] : memref<24x128xf32, #tpu.memory_space<vmem>>, vector<24x128xf32>
    %c0_3 = arith.constant 0 : index
    %c0_4 = arith.constant 0 : index
    %12 = vector.load %arg3[%c0_3, %c0_4] : memref<24x128xf32, #tpu.memory_space<vmem>>, vector<24x128xf32>
    %cst = arith.constant 1.000000e+00 : f32
    %13 = vector.shape_cast %10 : vector<24x1xi1> to vector<24x1xi1>
    %14 = vector.broadcast %13 : vector<24x1xi1> to vector<24x128xi1>
    %15 = vector.broadcast %cst : f32 to vector<24x128xf32>
    %16 = arith.select %14, %11, %15 : vector<24x128xi1>, vector<24x128xf32>
    %cst_5 = arith.constant 1.000000e+00 : f32
    %17 = vector.shape_cast %10 : vector<24x1xi1> to vector<24x1xi1>
    %18 = vector.broadcast %17 : vector<24x1xi1> to vector<24x128xi1>
    %19 = vector.broadcast %cst_5 : f32 to vector<24x128xf32>
    %20 = arith.select %18, %12, %19 : vector<24x128xi1>, vector<24x128xf32>
    %21 = arith.divf %20, %16 : vector<24x128xf32>
    %22 = math.log %21 : vector<24x128xf32>
    %23 = math.absf %22 : vector<24x128xf32>
    %24 = arith.subf %20, %16 : vector<24x128xf32>
    %25 = arith.mulf %24, %24 : vector<24x128xf32>
    %cst_6 = arith.constant 0.000000e+00 : f32
    %26 = vector.shape_cast %10 : vector<24x1xi1> to vector<24x1xi1>
    %27 = vector.broadcast %26 : vector<24x1xi1> to vector<24x128xi1>
    %28 = vector.broadcast %cst_6 : f32 to vector<24x128xf32>
    %29 = arith.select %27, %12, %28 : vector<24x128xi1>, vector<24x128xf32>
    %30 = arith.mulf %29, %29 : vector<24x128xf32>
    %31 = vector.shape_cast %23 : vector<24x128xf32> to vector<3x8x128xf32>
    %cst_7 = arith.constant dense<0.000000e+00> : vector<8x128xf32>
    %32 = vector.multi_reduction <add>, %31, %cst_7 [0] : vector<3x8x128xf32> to vector<8x128xf32>
    %c0_8 = arith.constant 0 : index
    %c0_9 = arith.constant 0 : index
    %c0_10 = arith.constant 0 : index
    %33 = vector.load %arg4[%c0_8, %c0_9, %c0_10] : memref<1x8x128xf32, #tpu.memory_space<vmem>>, vector<1x8x128xf32>
    %34 = vector.shape_cast %32 : vector<8x128xf32> to vector<1x8x128xf32>
    %35 = arith.addf %33, %34 : vector<1x8x128xf32>
    %c0_11 = arith.constant 0 : index
    %c0_12 = arith.constant 0 : index
    %c0_13 = arith.constant 0 : index
    %36 = vector.load %arg4[%c0_11, %c0_12, %c0_13] : memref<1x8x128xf32, #tpu.memory_space<vmem>>, vector<1x8x128xf32>
    tpu.vector_store %arg4[%c0_11, %c0_12, %c0_13], %35 {strides = array<i32>} : memref<1x8x128xf32, #tpu.memory_space<vmem>>, vector<1x8x128xf32>,
    %37 = vector.shape_cast %25 : vector<24x128xf32> to vector<3x8x128xf32>
    %cst_14 = arith.constant dense<0.000000e+00> : vector<8x128xf32>
    %38 = vector.multi_reduction <add>, %37, %cst_14 [0] : vector<3x8x128xf32> to vector<8x128xf32>
    %c0_15 = arith.constant 0 : index
    %c0_16 = arith.constant 0 : index
    %c0_17 = arith.constant 0 : index
    %39 = vector.load %arg5[%c0_15, %c0_16, %c0_17] : memref<1x8x128xf32, #tpu.memory_space<vmem>>, vector<1x8x128xf32>
    %40 = vector.shape_cast %38 : vector<8x128xf32> to vector<1x8x128xf32>
    %41 = arith.addf %39, %40 : vector<1x8x128xf32>
    %c0_18 = arith.constant 0 : index
    %c0_19 = arith.constant 0 : index
    %c0_20 = arith.constant 0 : index
    %42 = vector.load %arg5[%c0_18, %c0_19, %c0_20] : memref<1x8x128xf32, #tpu.memory_space<vmem>>, vector<1x8x128xf32>
    tpu.vector_store %arg5[%c0_18, %c0_19, %c0_20], %41 {strides = array<i32>} : memref<1x8x128xf32, #tpu.memory_space<vmem>>, vector<1x8x128xf32>,
    %43 = vector.shape_cast %30 : vector<24x128xf32> to vector<3x8x128xf32>
    %cst_21 = arith.constant dense<0.000000e+00> : vector<8x128xf32>
    %44 = vector.multi_reduction <add>, %43, %cst_21 [0] : vector<3x8x128xf32> to vector<8x128xf32>
    %c0_22 = arith.constant 0 : index
    %c0_23 = arith.constant 0 : index
    %c0_24 = arith.constant 0 : index
    %45 = vector.load %arg6[%c0_22, %c0_23, %c0_24] : memref<1x8x128xf32, #tpu.memory_space<vmem>>, vector<1x8x128xf32>
    %46 = vector.shape_cast %44 : vector<8x128xf32> to vector<1x8x128xf32>
    %47 = arith.addf %45, %46 : vector<1x8x128xf32>
    %c0_25 = arith.constant 0 : index
    %c0_26 = arith.constant 0 : index
    %c0_27 = arith.constant 0 : index
    %48 = vector.load %arg6[%c0_25, %c0_26, %c0_27] : memref<1x8x128xf32, #tpu.memory_space<vmem>>, vector<1x8x128xf32>
    tpu.vector_store %arg6[%c0_25, %c0_26, %c0_27], %47 {strides = array<i32>} : memref<1x8x128xf32, #tpu.memory_space<vmem>>, vector<1x8x128xf32>,
    return
  }
  func.func @transform_0(%arg0: i32, %arg1: i32) -> (i32, i32) {
    %c1_i32 = arith.constant 1 : i32
    %0 = arith.muli %arg0, %c1_i32 : i32
    %1 = arith.addi %0, %arg1 : i32
    %c0_i32 = arith.constant 0 : i32
    %2 = arith.minsi %1, %c0_i32 : i32
    %c0_i32_0 = arith.constant 0 : i32
    %c0_i32_1 = arith.constant 0 : i32
    return %2, %c0_i32_0 : i32, i32
  }
  func.func @transform_1(%arg0: i32, %arg1: i32) -> (i32, i32) {
    %c1_i32 = arith.constant 1 : i32
    %0 = arith.muli %arg0, %c1_i32 : i32
    %1 = arith.addi %0, %arg1 : i32
    %c0_i32 = arith.constant 0 : i32
    %2 = arith.minsi %1, %c0_i32 : i32
    %c0_i32_0 = arith.constant 0 : i32
    %c0_i32_1 = arith.constant 0 : i32
    return %2, %c0_i32_0 : i32, i32
  }
  func.func @transform_2(%arg0: i32, %arg1: i32) -> (i32, i32, i32) {
    %c0_i32 = arith.constant 0 : i32
    %c0_i32_0 = arith.constant 0 : i32
    %c0_i32_1 = arith.constant 0 : i32
    return %arg0, %c0_i32, %c0_i32_0 : i32, i32, i32
  }
  func.func @transform_3(%arg0: i32, %arg1: i32) -> (i32, i32, i32) {
    %c0_i32 = arith.constant 0 : i32
    %c0_i32_0 = arith.constant 0 : i32
    %c0_i32_1 = arith.constant 0 : i32
    return %arg0, %c0_i32, %c0_i32_0 : i32, i32, i32
  }
  func.func @transform_4(%arg0: i32, %arg1: i32) -> (i32, i32, i32) {
    %c0_i32 = arith.constant 0 : i32
    %c0_i32_0 = arith.constant 0 : i32
    %c0_i32_1 = arith.constant 0 : i32
    return %arg0, %c0_i32, %c0_i32_0 : i32, i32, i32
  }
}

</mosaic_0001>

<llo_original>
// kernel: tpu_custom_call.1
$region0: #{tpu_custom_call.1}
  #allocation0 [shape = 'u32[]', space=smem, size = 0x4, offset = 0x4, fixed_abs, tag = 'smem constant byte address 0x4 - core index']
  #allocation1 [shape = 'u32[144,128]{1,0:T(1,128)}', space=vmem, size = 0x12000, scoped, tag = 'internal scratch']
  %s0 = inlined_call_operand.hbm [shape: f32[24,128], index: 0, kind: input, shape index: {}]
  %s1 = inlined_call_operand.hbm [shape: f32[24,128], index: 1, kind: input, shape index: {}]
  %s2 = inlined_call_operand.hbm [shape: f32[1,8,128], index: 2, kind: output, shape index: {0}]
  %s3 = inlined_call_operand.hbm [shape: f32[1,8,128], index: 3, kind: output, shape index: {1}]
  %s4 = inlined_call_operand.hbm [shape: f32[1,8,128], index: 4, kind: output, shape index: {2}]
  %5 = xla_tuple %s2, %s3, %s4
  %s6 = sld [smem:[#allocation0]]
  $region46: #{tpu_custom_call.1} parent=0
    _
  %s8 = ssub.s32 1, %s6
  %s9 = scalar_select 0, %s8, %s6
  $region1: #{tpu_custom_call.1} parent=0
    #allocation2 [shape = 'u8[12288]{0}', space=vmem, size = 0x3000, scoped, tag = 'input window, operand 0, single buffered']
    #allocation3 [shape = 's32[1]{0}', space=sflag, size = 0x4, scoped, tag = 'scoped memory for tpu_custom_call.1']
    #allocation4 [shape = 's32[1]{0}', space=sflag, size = 0x4, scoped, tag = 'scoped memory for tpu_custom_call.1']
    #allocation5 [shape = 'u8[12288]{0}', space=vmem, size = 0x3000, scoped, tag = 'input window, operand 1, single buffered']
    #allocation6 [shape = 's32[1]{0}', space=sflag, size = 0x4, scoped, tag = 'scoped memory for tpu_custom_call.1']
    #allocation7 [shape = 'u8[4096]{0}', space=vmem, size = 0x1000, scoped, tag = 'output window, operand 0, single buffered']
    #allocation8 [shape = 'u8[4096]{0}', space=vmem, size = 0x1000, scoped, tag = 'output window, operand 1, single buffered']
    #allocation9 [shape = 's32[1]{0}', space=sflag, size = 0x4, scoped, tag = 'scoped memory for tpu_custom_call.1']
    #allocation10 [shape = 'u8[4096]{0}', space=vmem, size = 0x1000, scoped, tag = 'output window, operand 2, single buffered']
    %10 = vsyncpa [#allocation3], 0
    %11 = vsyncpa [#allocation6], 0
    %12 = vsyncpa [#allocation4], 0
    %13 = vsyncpa [#allocation9], 0
    // Predicated region
    $region2: #{tpu_custom_call.1} parent=1 // pred_check
      _
    $region3: #{tpu_custom_call.1} parent=1 // pred_check_branch
      %15 = sbr.rel (0) target = $region5
    $region4: #{tpu_custom_call.1} parent=1 // pred_region
      %s16 = sadd.s32 0, 0
      %p17 = scmp.lt.s32.totalorder %s16, 0
      %s18 = scalar_select %p17, %s16, 0
      %s19 = smul.u32 3, %s18
      %s21 = ssub.s32 384, 384
      %22 = vsyncadd [#allocation3], %s21
      %s23 = smul.addr %s19, 128
      %s24 = scalar_lea.hbm %s0, %s23
      %s25 = sshll.u32 [#allocation2], 4
      %s26 = int_to_ptr.vmem [resolvable:$true] %s25
      %31 = dma.hbm_to_vmem [thread:$0]  %s24, 384, %s26, [#allocation3], 128, 128, 8
    $region5: #{tpu_custom_call.1} parent=1 // pred_fallthru
      _
    // Predicated region
    $region6: #{tpu_custom_call.1} parent=1 // pred_check
      _
    $region7: #{tpu_custom_call.1} parent=1 // pred_check_branch
      %33 = sbr.rel (0) target = $region9
    $region8: #{tpu_custom_call.1} parent=1 // pred_region
      %s34 = sadd.s32 0, 0
      %p35 = scmp.lt.s32.totalorder %s34, 0
      %s36 = scalar_select %p35, %s34, 0
      %s37 = smul.u32 3, %s36
      %s39 = ssub.s32 384, 384
      %40 = vsyncadd [#allocation6], %s39
      %s41 = smul.addr %s37, 128
      %s42 = scalar_lea.hbm %s1, %s41
      %s43 = sshll.u32 [#allocation5], 4
      %s44 = int_to_ptr.vmem [resolvable:$true] %s43
      %49 = dma.hbm_to_vmem [thread:$0]  %s42, 384, %s44, [#allocation6], 128, 128, 8
    $region9: #{tpu_custom_call.1} parent=1 // pred_fallthru
      _
    // Predicated region
    $region10: #{tpu_custom_call.1} parent=1 // pred_check
      _
    $region11: #{tpu_custom_call.1} parent=1 // pred_check_branch
      %51 = sbr.rel (0) target = $region13
    $region12: #{tpu_custom_call.1} parent=1 // pred_region
      %52 = dma.done [#allocation3], 384
    $region13: #{tpu_custom_call.1} parent=1 // pred_fallthru
      _
    // Predicated region
    $region14: #{tpu_custom_call.1} parent=1 // pred_check
      _
    $region15: #{tpu_custom_call.1} parent=1 // pred_check_branch
      %54 = sbr.rel (0) target = $region17
    $region16: #{tpu_custom_call.1} parent=1 // pred_region
      %55 = dma.done [#allocation6], 384
    $region17: #{tpu_custom_call.1} parent=1 // pred_fallthru
      _
    %s56 = sadd.s32 0, 0
    %p57 = scmp.lt.s32.totalorder %s56, 0
    %s58 = scalar_select %p57, %s56, 0
    %s59 = smul.u32 3, %s58
    %s60 = sadd.s32 0, 0
    %p61 = scmp.lt.s32.totalorder %s60, 0
    %s62 = scalar_select %p61, %s60, 0
    %s63 = smul.u32 3, %s62
    %p64 = scmp.eq.s32.totalorder 0, 0
    // Predicated region
    $region18: #{tpu_custom_call.1} parent=1 // pred_check
      %p65 = pneg %p64
    $region19: #{tpu_custom_call.1} parent=1 // pred_check_branch
      %67 = sbr.rel (%p65) target = $region21
    $region20: #{tpu_custom_call.1} parent=1 // pred_region
      %68 = vst [vmem:[#allocation7] sm:$0xff] 0.0
      %69 = vst [vmem:[#allocation8] sm:$0xff] 0.0
      %70 = vst [vmem:[#allocation10] sm:$0xff] 0.0
    $region21: #{tpu_custom_call.1} parent=1 // pred_fallthru
      _
    %s71 = sadd.s32 0, 0
    %s72 = smul.u32 %s71, 24
    %v73 = vlaneseq
    %v74 = vshrl.u32 %v73, 7
    %v75 = vadd.s32 %v74, 8
    %v76 = vadd.s32 %v74, 16
    %v77 = vstv %s72
    %v78 = vadd.s32 %v74, %v77
    %v79 = vadd.s32 %v75, %v77
    %v80 = vadd.s32 %v76, %v77
    %vm81 = vcmp.lt.s32.totalorder %v78, 24
    %vm82 = vcmp.lt.s32.totalorder %v79, 24
    %vm83 = vcmp.lt.s32.totalorder %v80, 24
    %v84 = vld [vmem:[#allocation2] sm:$0xff]
    %v85 = vld [vmem:[#allocation2 + $0x8] sm:$0xff]
    %v86 = vld [vmem:[#allocation2 + $0x10] sm:$0xff]
    %v87 = vld [vmem:[#allocation5] sm:$0xff]
    %v88 = vld [vmem:[#allocation5 + $0x8] sm:$0xff]
    %v89 = vld [vmem:[#allocation5 + $0x10] sm:$0xff]
    %v90 = vsel %vm81, 1, 0
    %v91 = vsel %vm82, 1, 0
    %v92 = vsel %vm83, 1, 0
    %vm93 = vcmp.eq.s32.totalorder %v90, 1
    %vm94 = vcmp.eq.s32.totalorder %v91, 1
    %vm95 = vcmp.eq.s32.totalorder %v92, 1
    %v96 = vsel %vm93, %v84, 1.0
    %v97 = vsel %vm94, %v85, 1.0
    %v98 = vsel %vm95, %v86, 1.0
    %v99 = vsel %vm93, %v87, 1.0
    %v100 = vsel %vm94, %v88, 1.0
    %v101 = vsel %vm95, %v89, 1.0
    %v102 = vrcp.pop %v96
    %v103 = vmul.f32 %v99, %v102
    %v104 = vrcp.pop %v97
    %v105 = vmul.f32 %v100, %v104
    %v106 = vrcp.pop %v98
    %v107 = vmul.f32 %v101, %v106
    %v108 = vlog2.pop %v103
    %v109 = vmul.f32 %v108, 0.6931472
    %v110 = vlog2.pop %v105
    %v111 = vmul.f32 %v110, 0.6931472
    %v112 = vlog2.pop %v107
    %v113 = vmul.f32 %v112, 0.6931472
    %v114 = vand.u32 2147483647, %v109
    %v115 = vand.u32 2147483647, %v111
    %v116 = vand.u32 2147483647, %v113
    %v117 = vsub.f32 %v99, %v96
    %v118 = vsub.f32 %v100, %v97
    %v119 = vsub.f32 %v101, %v98
    %v120 = vmul.f32 %v117, %v117
    %v121 = vmul.f32 %v118, %v118
    %v122 = vmul.f32 %v119, %v119
    %v123 = vsel %vm93, %v87, 0.0
    %v124 = vsel %vm94, %v88, 0.0
    %v125 = vsel %vm95, %v89, 0.0
    %v126 = vmul.f32 %v123, %v123
    %v127 = vmul.f32 %v124, %v124
    %v128 = vmul.f32 %v125, %v125
    %v129 = vadd.f32 %v114, %v115
    %v130 = vadd.f32 %v129, %v116
    %v131 = vld [vmem:[#allocation7] sm:$0xff]
    %v132 = vadd.f32 %v131, %v130
    %133 = vst [vmem:[#allocation7] sm:$0xff] %v132
    %v134 = vadd.f32 %v120, %v121
    %v135 = vadd.f32 %v134, %v122
    %v136 = vld [vmem:[#allocation8] sm:$0xff]
    %v137 = vadd.f32 %v136, %v135
    %138 = vst [vmem:[#allocation8] sm:$0xff] %v137
    %v139 = vadd.f32 %v126, %v127
    %v140 = vadd.f32 %v139, %v128
    %v141 = vld [vmem:[#allocation10] sm:$0xff]
    %v142 = vadd.f32 %v141, %v140
    %143 = vst [vmem:[#allocation10] sm:$0xff] %v142
    // Predicated region
    $region22: #{tpu_custom_call.1} parent=1 // pred_check
      _
    $region23: #{tpu_custom_call.1} parent=1 // pred_check_branch
      %145 = sbr.rel (0) target = $region25
    $region24: #{tpu_custom_call.1} parent=1 // pred_region
      %s147 = ssub.s32 128, 128
      %148 = vsyncadd [#allocation4], %s147
      %s150 = sshll.u32 [#allocation7], 4
      %s151 = int_to_ptr.vmem [resolvable:$true] %s150
      %153 = dma.vmem_to_hbm [thread:$0]  %s151, 128, %s2, [#allocation4]
    $region25: #{tpu_custom_call.1} parent=1 // pred_fallthru
      _
    // Predicated region
    $region26: #{tpu_custom_call.1} parent=1 // pred_check
      _
    $region27: #{tpu_custom_call.1} parent=1 // pred_check_branch
      %155 = sbr.rel (0) target = $region29
    $region28: #{tpu_custom_call.1} parent=1 // pred_region
      %s157 = ssub.s32 128, 128
      %158 = vsyncadd [#allocation9], %s157
      %s160 = sshll.u32 [#allocation8], 4
      %s161 = int_to_ptr.vmem [resolvable:$true] %s160
      %163 = dma.vmem_to_hbm [thread:$0]  %s161, 128, %s3, [#allocation9]
    $region29: #{tpu_custom_call.1} parent=1 // pred_fallthru
      _
    // Predicated region
    $region30: #{tpu_custom_call.1} parent=1 // pred_check
      _
    $region31: #{tpu_custom_call.1} parent=1 // pred_check_branch
      %165 = sbr.rel (0) target = $region33
    $region32: #{tpu_custom_call.1} parent=1 // pred_region
      %s167 = ssub.s32 128, 128
      %168 = vsyncadd [#allocation9], %s167
      %s170 = sshll.u32 [#allocation10], 4
      %s171 = int_to_ptr.vmem [resolvable:$true] %s170
      %173 = dma.vmem_to_hbm [thread:$0]  %s171, 128, %s4, [#allocation9]
    $region33: #{tpu_custom_call.1} parent=1 // pred_fallthru
      _
    // Predicated region
    $region34: #{tpu_custom_call.1} parent=1 // pred_check
      _
    $region35: #{tpu_custom_call.1} parent=1 // pred_check_branch
      %175 = sbr.rel (0) target = $region37
    $region36: #{tpu_custom_call.1} parent=1 // pred_region
      %176 = dma.done [#allocation4], 128
    $region37: #{tpu_custom_call.1} parent=1 // pred_fallthru
      _
    // Predicated region
    $region38: #{tpu_custom_call.1} parent=1 // pred_check
      _
    $region39: #{tpu_custom_call.1} parent=1 // pred_check_branch
      %178 = sbr.rel (0) target = $region41
    $region40: #{tpu_custom_call.1} parent=1 // pred_region
      %179 = dma.done [#allocation9], 128
    $region41: #{tpu_custom_call.1} parent=1 // pred_fallthru
      _
    // Predicated region
    $region42: #{tpu_custom_call.1} parent=1 // pred_check
      _
    $region43: #{tpu_custom_call.1} parent=1 // pred_check_branch
      %181 = sbr.rel (0) target = $region45
    $region44: #{tpu_custom_call.1} parent=1 // pred_region
      %182 = dma.done [#allocation9], 128
    $region45: #{tpu_custom_call.1} parent=1 // pred_fallthru
      _
    %183 = vsyncpa [#allocation3], 1
    %184 = vsyncpa [#allocation6], 1
    %185 = vsyncpa [#allocation4], 1
    %186 = vsyncpa [#allocation9], 1

</llo_original>
